<compile_context>
chip_gen: v5e
topology: v5e:2x2
jax: 0.10.0
libtpu: 0.0.40
codegen_flags: <defaults>
</compile_context>

<pallas_src>
import jax
import jax.numpy as jnp
from jax.experimental import pallas as pl
from jax.experimental.pallas import tpu as pltpu


def ca_kernel(x_ref, pcat_ref, eh_ref, ew_ref,
              w1_ref, b1_ref, w2_ref, b2_ref, w3_ref, b3_ref, o_ref):
    bn, C, HW = x_ref.shape
    L = pcat_ref.shape[1]            # H + W
    cdt = x_ref.dtype                # storage/compute dtype of x (f32 or bf16)

    x = x_ref[...]                   # (bn, C, HW), lane-dense flattened spatial
    xf = x.reshape(bn * C, HW)       # free leading-dim collapse (C % 8 == 0)

    # --- Fused adaptive average pools (mean over W | mean over H) -----------
    # One block-level matmul replaces 2*bn per-image pooling matmuls.
    x_cat = jnp.dot(xf, pcat_ref[...],
                    preferred_element_type=jnp.float32)           # (bn*C, L)
    x_cat3 = x_cat.reshape(bn, C, L).astype(cdt)

    # --- conv1 (+ folded eval-mode BN) + h_swish, batched over the block ----
    w1 = jnp.broadcast_to(w1_ref[...], (bn,) + w1_ref.shape)      # (bn, T, C)
    z = jnp.einsum('btc,bcl->btl', w1, x_cat3,
                   preferred_element_type=jnp.float32) + b1_ref[...][None]
    y = (z * (jnp.clip(z + 3.0, 0.0, 6.0) * (1.0 / 6.0))).astype(cdt)  # h_swish

    # --- conv2 / conv3 + sigmoid over the full H+W axis ---------------------
    # The zero-padded expansion matrices below pick out the H / W halves, so
    # no unaligned lane slicing of y is needed.
    w2 = jnp.broadcast_to(w2_ref[...], (bn,) + w2_ref.shape)      # (bn, C, T)
    w3 = jnp.broadcast_to(w3_ref[...], (bn,) + w3_ref.shape)      # (bn, C, T)
    a_h = jax.nn.sigmoid(
        jnp.einsum('bct,btl->bcl', w2, y,
                   preferred_element_type=jnp.float32) + b2_ref[...][None])
    a_w = jax.nn.sigmoid(
        jnp.einsum('bct,btl->bcl', w3, y,
                   preferred_element_type=jnp.float32) + b3_ref[...][None])

    # --- Expand to the flattened spatial axis and apply: out = x*a_w*a_h ----
    att = (jnp.dot(a_h.reshape(bn * C, L).astype(cdt), eh_ref[...],
                   preferred_element_type=jnp.float32) *
           jnp.dot(a_w.reshape(bn * C, L).astype(cdt), ew_ref[...],
                   preferred_element_type=jnp.float32))           # (bn*C, HW)

    o_ref[...] = (xf * att).reshape(bn, C, HW).astype(o_ref.dtype)


def _vmem_limit_bytes():
    """Generation-aware scoped-VMEM limit: ~half of physical VMEM, capped.

    v5e/v6e have 128 MiB physical VMEM -> 64 MiB limit; v7x has 64 MiB ->
    32 MiB limit. Falls back to 32 MiB, safe on all three generations.
    """
    try:
        info = pltpu.get_tpu_info()
        cap = getattr(info, "vmem_capacity_bytes", None)
        if cap:
            return int(min(cap // 2, 64 * 1024 * 1024))
    except Exception:
        pass
    return 32 * 1024 * 1024


def _num_tensorcores():
    """Best-effort TensorCore count (v7x has 2 per chip); defaults to 1."""
    try:
        info = pltpu.get_tpu_info()
        for name in ("num_cores", "num_tensorcores", "tensorcores_per_chip",
                     "cores_per_chip"):
            v = getattr(info, name, None)
            if isinstance(v, int) and v > 0:
                return v
    except Exception:
        pass
    return 1


def _pick_batch_block(n, per_image_bytes, vmem_limit_bytes, const_bytes,
                      min_steps=1, max_block_bytes=8 << 20):
    """Largest divisor of `n` whose (bn, C, HW) block fits the VMEM budget.

    Budget model: the x block and out block are each double-buffered by the
    pipeline (~4x block bytes) and in-kernel f32 intermediates add ~2x more,
    so we size against ~6x block bytes after reserving the (double-buffered)
    constant selector matrices.
    """
    budget = max(vmem_limit_bytes - 2 * const_bytes, vmem_limit_bytes // 8)
    cap_bytes = min(budget // 6, max_block_bytes)
    bn_cap = max(1, int(cap_bytes // max(per_image_bytes, 1)))
    bn_cap = min(bn_cap, 128)          # bound the batched-einsum batch count
    if min_steps > 1:                  # keep >= 2 grid steps on multi-TC chips
        bn_cap = min(bn_cap, max(1, n // min_steps))
    bn = 1
    for cand in range(1, n + 1):
        if n % cand == 0 and cand <= bn_cap:
            bn = cand
    return bn


def ca_forward(x, w1, b1, bn_scale, bn_shift, w2, b2, w3, b3):
    N, C, H, W = x.shape
    T = w1.shape[0]
    HW, L = H * W, H + W
    f32 = jnp.float32
    cdt = x.dtype      # constants/weights follow x's dtype (narrow for bf16)

    # Fold eval-mode BatchNorm into conv1 (in f32, then cast).
    w1f = (bn_scale.astype(f32) * w1.astype(f32)).astype(cdt)               # (T, C)
    b1f = (bn_scale.astype(f32) * b1.astype(f32) + bn_shift.astype(f32))    # (T, 1) f32

    # Constant selector matrices (built once, tiny):
    #   p_cat : (HW, H+W)  fused mean-over-W | mean-over-H pooling (the `cat`)
    #   eh_pad: (H+W, HW)  0/1 expansion of the H attention (zero rows for W part)
    #   ew_pad: (H+W, HW)  0/1 expansion of the W attention (zero rows for H part)
    lane = jnp.arange(HW)
    e_h = (lane[None, :] // W == jnp.arange(H)[:, None]).astype(f32)        # (H, HW)
    e_w = (lane[None, :] % W == jnp.arange(W)[:, None]).astype(f32)         # (W, HW)
    p_cat = jnp.concatenate([e_h.T / W, e_w.T / H], axis=1).astype(cdt)     # (HW, L)
    eh_pad = jnp.concatenate([e_h, jnp.zeros((W, HW), f32)], axis=0).astype(cdt)
    ew_pad = jnp.concatenate([jnp.zeros((H, HW), f32), e_w], axis=0).astype(cdt)

    w2c, w3c = w2.astype(cdt), w3.astype(cdt)
    b2f, b3f = b2.astype(f32), b3.astype(f32)

    itemsize = jnp.dtype(cdt).itemsize
    const_bytes = int((p_cat.size + eh_pad.size + ew_pad.size) * itemsize)
    vmem_limit = _vmem_limit_bytes()
    min_steps = 2 if (_num_tensorcores() >= 2 and N >= 2) else 1
    bn = _pick_batch_block(N, C * HW * itemsize, vmem_limit, const_bytes,
                           min_steps=min_steps)
    grid = (N // bn,)
    # TODO(synk): add an HW-tiling fallback (two-pass, 'arbitrary' reduction
    # axis) for feature maps where even a single (1, C, HW) block plus the
    # selector constants does not fit the v7x VMEM budget.

    x_flat = x.reshape(N, C, HW)

    def const(shape):
        return pl.BlockSpec(shape, lambda n: (0, 0))

    out_flat = pl.pallas_call(
        ca_kernel,
        out_shape=jax.ShapeDtypeStruct((N, C, HW), x.dtype),
        grid_spec=pltpu.PrefetchScalarGridSpec(
            num_scalar_prefetch=0,
            grid=grid,
            in_specs=[
                pl.BlockSpec((bn, C, HW), lambda n: (n, 0, 0)),   # x (flattened)
                const((HW, L)),   # p_cat
                const((L, HW)),   # eh_pad
                const((L, HW)),   # ew_pad
                const((T, C)),    # w1 (BN folded)
                const((T, 1)),    # b1 (BN folded, f32)
                const((C, T)),    # w2
                const((C, 1)),    # b2
                const((C, T)),    # w3
                const((C, 1)),    # b3
            ],
            out_specs=pl.BlockSpec((bn, C, HW), lambda n: (n, 0, 0)),
        ),
        compiler_params=pltpu.CompilerParams(
            dimension_semantics=("parallel",),
            vmem_limit_bytes=vmem_limit),
    )(x_flat, p_cat, eh_pad, ew_pad, w1f, b1f, w2c, b2f, w3c, b3f)

    return out_flat.reshape(N, C, H, W)


def ca_reference(x, w1, b1, bn_scale, bn_shift, w2, b2, w3, b3):
    """Pure-JAX reference mirroring the PyTorch forward (eval-mode BN)."""
    N, C, H, W = x.shape
    x_h = jnp.mean(x, axis=3)                               # (N, C, H)  pool over W
    x_w = jnp.mean(x, axis=2)                               # (N, C, W)  pool over H
    cat = jnp.concatenate([x_h, x_w], axis=2)               # (N, C, H+W)
    y = jnp.einsum('tc,ncl->ntl', w1, cat) + b1[None]
    y = y * bn_scale[None] + bn_shift[None]
    y = y * jnp.clip(y + 3.0, 0.0, 6.0) / 6.0
    y_h, y_w = y[..., :H], y[..., H:]
    a_h = jax.nn.sigmoid(jnp.einsum('ot,ntl->nol', w2, y_h) + b2[None])  # (N, C, H)
    a_w = jax.nn.sigmoid(jnp.einsum('ot,ntl->nol', w3, y_w) + b3[None])  # (N, C, W)
    return x * a_w[:, :, None, :] * a_h[:, :, :, None]


if __name__ == "__main__":
    # Small shapes consistent with the module; out_channels == in_channels so
    # the final broadcasted multiply is well defined (standard CA usage).
    N, C, H, W = 2, 16, 16, 16
    reduction = 32
    T = max(8, C // reduction)     # temp_c = 8

    key = jax.random.PRNGKey(0)
    ks = jax.random.split(key, 7)
    x = jax.random.normal(ks[0], (N, C, H, W), jnp.float32)

    # Deterministic synthetic parameters (1x1 conv weights squeezed to 2-D).
    w1 = jax.random.normal(ks[1], (T, C), jnp.float32) * 0.1
    b1 = jax.random.normal(ks[2], (T, 1), jnp.float32) * 0.1
    w2 = jax.random.normal(ks[3], (C, T), jnp.float32) * 0.1
    b2 = jax.random.normal(ks[4], (C, 1), jnp.float32) * 0.1
    w3 = jax.random.normal(ks[5], (C, T), jnp.float32) * 0.1
    b3 = jax.random.normal(ks[6], (C, 1), jnp.float32) * 0.1

    # BatchNorm2d defaults: gamma=1, beta=0, running_mean=0, running_var=1.
    eps = 1e-5
    gamma = jnp.ones((T, 1), jnp.float32)
    beta = jnp.zeros((T, 1), jnp.float32)
    rmean = jnp.zeros((T, 1), jnp.float32)
    rvar = jnp.ones((T, 1), jnp.float32)
    bn_scale = gamma / jnp.sqrt(rvar + eps)
    bn_shift = beta - rmean * bn_scale

    out = ca_forward(x, w1, b1, bn_scale, bn_shift, w2, b2, w3, b3)
    out = jax.block_until_ready(out)

    ref = ca_reference(x, w1, b1, bn_scale, bn_shift, w2, b2, w3, b3)
    assert out.shape == (N, C, H, W)
    assert jnp.allclose(out, ref, atol=5e-5, rtol=5e-5), "mismatch vs reference"

    print("KERNEL_OK")
</pallas_src>

<mosaic_0001>
module attributes {stable_mosaic.version = 11 : i64} {
  func.func @ca_kernel(%arg0: i32, %arg1: memref<2x16x256xf32, #tpu.memory_space<vmem>>, %arg2: memref<256x32xf32, #tpu.memory_space<vmem>>, %arg3: memref<32x256xf32, #tpu.memory_space<vmem>>, %arg4: memref<32x256xf32, #tpu.memory_space<vmem>>, %arg5: memref<8x16xf32, #tpu.memory_space<vmem>>, %arg6: memref<8x1xf32, #tpu.memory_space<vmem>>, %arg7: memref<16x8xf32, #tpu.memory_space<vmem>>, %arg8: memref<16x1xf32, #tpu.memory_space<vmem>>, %arg9: memref<16x8xf32, #tpu.memory_space<vmem>>, %arg10: memref<16x1xf32, #tpu.memory_space<vmem>>, %arg11: memref<2x16x256xf32, #tpu.memory_space<vmem>>) attributes {dimension_semantics = [#tpu.dimension_semantics<parallel>], iteration_bounds = array<i64: 1>, scalar_prefetch = 0 : i64, scratch_operands = 0 : i64, tpu.core_type = #tpu.core_type<tc>, window_params = [{transform_indices = @transform_0, window_bounds = array<i64: 2, 16, 256>}, {pipeline_mode = #tpu.pipeline_mode<synchronous>, transform_indices = @transform_1, window_bounds = array<i64: 256, 32>}, {pipeline_mode = #tpu.pipeline_mode<synchronous>, transform_indices = @transform_2, window_bounds = array<i64: 32, 256>}, {pipeline_mode = #tpu.pipeline_mode<synchronous>, transform_indices = @transform_3, window_bounds = array<i64: 32, 256>}, {pipeline_mode = #tpu.pipeline_mode<synchronous>, transform_indices = @transform_4, window_bounds = array<i64: 8, 16>}, {pipeline_mode = #tpu.pipeline_mode<synchronous>, transform_indices = @transform_5, window_bounds = array<i64: 8, 1>}, {pipeline_mode = #tpu.pipeline_mode<synchronous>, transform_indices = @transform_6, window_bounds = array<i64: 16, 8>}, {pipeline_mode = #tpu.pipeline_mode<synchronous>, transform_indices = @transform_7, window_bounds = array<i64: 16, 1>}, {pipeline_mode = #tpu.pipeline_mode<synchronous>, transform_indices = @transform_8, window_bounds = array<i64: 16, 8>}, {pipeline_mode = #tpu.pipeline_mode<synchronous>, transform_indices = @transform_9, window_bounds = array<i64: 16, 1>}, {transform_indices = @transform_10, window_bounds = array<i64: 2, 16, 256>}]} {
    %c0 = arith.constant 0 : index
    %c0_0 = arith.constant 0 : index
    %c0_1 = arith.constant 0 : index
    %0 = vector.load %arg1[%c0, %c0_0, %c0_1] : memref<2x16x256xf32, #tpu.memory_space<vmem>>, vector<2x16x256xf32>
    %1 = vector.shape_cast %0 : vector<2x16x256xf32> to vector<32x256xf32>
    %c0_2 = arith.constant 0 : index
    %c0_3 = arith.constant 0 : index
    %2 = vector.load %arg2[%c0_2, %c0_3] : memref<256x32xf32, #tpu.memory_space<vmem>>, vector<256x32xf32>
    %cst = arith.constant dense<0.000000e+00> : vector<32x32xf32>
    %3 = tpu.matmul %1, %2, %cst {dimension_numbers = #tpu.dot_dimension_numbers<[1], [0], [0], [1], [0, 0, 1, 1], [], []>} : vector<32x256xf32>, vector<256x32xf32>, vector<32x32xf32> -> vector<32x32xf32>
    %4 = vector.shape_cast %3 : vector<32x32xf32> to vector<2x16x32xf32>
    %c0_4 = arith.constant 0 : index
    %c0_5 = arith.constant 0 : index
    %5 = vector.load %arg5[%c0_4, %c0_5] : memref<8x16xf32, #tpu.memory_space<vmem>>, vector<8x16xf32>
    %6 = vector.shape_cast %5 : vector<8x16xf32> to vector<1x8x16xf32>
    %7 = vector.broadcast %6 : vector<1x8x16xf32> to vector<2x8x16xf32>
    "tpu.trace_start"() <{level = 10 : i32, message = "btc,bcl->btl"}> : () -> ()
    %cst_6 = arith.constant dense<0.000000e+00> : vector<2x8x32xf32>
    %8 = tpu.matmul %7, %4, %cst_6 {dimension_numbers = #tpu.dot_dimension_numbers<[2], [1], [1], [2], [0, 0, 0, 1, 1, 2], [0], [0]>} : vector<2x8x16xf32>, vector<2x16x32xf32>, vector<2x8x32xf32> -> vector<2x8x32xf32>
    "tpu.trace_stop"() : () -> ()
    %c0_7 = arith.constant 0 : index
    %c0_8 = arith.constant 0 : index
    %9 = vector.load %arg6[%c0_7, %c0_8] : memref<8x1xf32, #tpu.memory_space<vmem>>, vector<8x1xf32>
    %10 = vector.shape_cast %9 : vector<8x1xf32> to vector<1x8x1xf32>
    %11 = vector.broadcast %10 : vector<1x8x1xf32> to vector<2x8x32xf32>
    %12 = arith.addf %8, %11 : vector<2x8x32xf32>
    %cst_9 = arith.constant 3.000000e+00 : f32
    %13 = vector.broadcast %cst_9 : f32 to vector<2x8x32xf32>
    %14 = arith.addf %12, %13 : vector<2x8x32xf32>
    %cst_10 = arith.constant 0.000000e+00 : f32
    %cst_11 = arith.constant 6.000000e+00 : f32
    %15 = vector.broadcast %cst_10 : f32 to vector<2x8x32xf32>
    %16 = arith.maximumf %15, %14 : vector<2x8x32xf32>
    %17 = vector.broadcast %cst_11 : f32 to vector<2x8x32xf32>
    %18 = arith.minimumf %17, %16 : vector<2x8x32xf32>
    %cst_12 = arith.constant 0.166666672 : f32
    %19 = vector.broadcast %cst_12 : f32 to vector<2x8x32xf32>
    %20 = arith.mulf %18, %19 : vector<2x8x32xf32>
    %21 = arith.mulf %12, %20 : vector<2x8x32xf32>
    %c0_13 = arith.constant 0 : index
    %c0_14 = arith.constant 0 : index
    %22 = vector.load %arg7[%c0_13, %c0_14] : memref<16x8xf32, #tpu.memory_space<vmem>>, vector<16x8xf32>
    %23 = vector.shape_cast %22 : vector<16x8xf32> to vector<1x16x8xf32>
    %24 = vector.broadcast %23 : vector<1x16x8xf32> to vector<2x16x8xf32>
    %c0_15 = arith.constant 0 : index
    %c0_16 = arith.constant 0 : index
    %25 = vector.load %arg9[%c0_15, %c0_16] : memref<16x8xf32, #tpu.memory_space<vmem>>, vector<16x8xf32>
    %26 = vector.shape_cast %25 : vector<16x8xf32> to vector<1x16x8xf32>
    %27 = vector.broadcast %26 : vector<1x16x8xf32> to vector<2x16x8xf32>
    "tpu.trace_start"() <{level = 10 : i32, message = "bct,btl->bcl"}> : () -> ()
    %cst_17 = arith.constant dense<0.000000e+00> : vector<2x16x32xf32>
    %28 = tpu.matmul %24, %21, %cst_17 {dimension_numbers = #tpu.dot_dimension_numbers<[2], [1], [1], [2], [0, 0, 0, 1, 1, 2], [0], [0]>} : vector<2x16x8xf32>, vector<2x8x32xf32>, vector<2x16x32xf32> -> vector<2x16x32xf32>
    "tpu.trace_stop"() : () -> ()
    %c0_18 = arith.constant 0 : index
    %c0_19 = arith.constant 0 : index
    %29 = vector.load %arg8[%c0_18, %c0_19] : memref<16x1xf32, #tpu.memory_space<vmem>>, vector<16x1xf32>
    %30 = vector.shape_cast %29 : vector<16x1xf32> to vector<1x16x1xf32>
    %31 = vector.broadcast %30 : vector<1x16x1xf32> to vector<2x16x32xf32>
    %32 = arith.addf %28, %31 : vector<2x16x32xf32>
    %33 = arith.negf %32 : vector<2x16x32xf32>
    %34 = math.exp %33 : vector<2x16x32xf32>
    %cst_20 = arith.constant 1.000000e+00 : f32
    %35 = vector.broadcast %cst_20 : f32 to vector<2x16x32xf32>
    %36 = arith.addf %35, %34 : vector<2x16x32xf32>
    %37 = arith.divf %35, %36 : vector<2x16x32xf32>
    "tpu.trace_start"() <{level = 10 : i32, message = "bct,btl->bcl"}> : () -> ()
    %cst_21 = arith.constant dense<0.000000e+00> : vector<2x16x32xf32>
    %38 = tpu.matmul %27, %21, %cst_21 {dimension_numbers = #tpu.dot_dimension_numbers<[2], [1], [1], [2], [0, 0, 0, 1, 1, 2], [0], [0]>} : vector<2x16x8xf32>, vector<2x8x32xf32>, vector<2x16x32xf32> -> vector<2x16x32xf32>
    "tpu.trace_stop"() : () -> ()
    %c0_22 = arith.constant 0 : index
    %c0_23 = arith.constant 0 : index
    %39 = vector.load %arg10[%c0_22, %c0_23] : memref<16x1xf32, #tpu.memory_space<vmem>>, vector<16x1xf32>
    %40 = vector.shape_cast %39 : vector<16x1xf32> to vector<1x16x1xf32>
    %41 = vector.broadcast %40 : vector<1x16x1xf32> to vector<2x16x32xf32>
    %42 = arith.addf %38, %41 : vector<2x16x32xf32>
    %43 = arith.negf %42 : vector<2x16x32xf32>
    %44 = math.exp %43 : vector<2x16x32xf32>
    %cst_24 = arith.constant 1.000000e+00 : f32
    %45 = vector.broadcast %cst_24 : f32 to vector<2x16x32xf32>
    %46 = arith.addf %45, %44 : vector<2x16x32xf32>
    %47 = arith.divf %45, %46 : vector<2x16x32xf32>
    %48 = vector.shape_cast %37 : vector<2x16x32xf32> to vector<32x32xf32>
    %c0_25 = arith.constant 0 : index
    %c0_26 = arith.constant 0 : index
    %49 = vector.load %arg3[%c0_25, %c0_26] : memref<32x256xf32, #tpu.memory_space<vmem>>, vector<32x256xf32>
    %cst_27 = arith.constant dense<0.000000e+00> : vector<32x256xf32>
    %50 = tpu.matmul %48, %49, %cst_27 {dimension_numbers = #tpu.dot_dimension_numbers<[1], [0], [0], [1], [0, 0, 1, 1], [], []>} : vector<32x32xf32>, vector<32x256xf32>, vector<32x256xf32> -> vector<32x256xf32>
    %51 = vector.shape_cast %47 : vector<2x16x32xf32> to vector<32x32xf32>
    %c0_28 = arith.constant 0 : index
    %c0_29 = arith.constant 0 : index
    %52 = vector.load %arg4[%c0_28, %c0_29] : memref<32x256xf32, #tpu.memory_space<vmem>>, vector<32x256xf32>
    %cst_30 = arith.constant dense<0.000000e+00> : vector<32x256xf32>
    %53 = tpu.matmul %51, %52, %cst_30 {dimension_numbers = #tpu.dot_dimension_numbers<[1], [0], [0], [1], [0, 0, 1, 1], [], []>} : vector<32x32xf32>, vector<32x256xf32>, vector<32x256xf32> -> vector<32x256xf32>
    %54 = arith.mulf %50, %53 : vector<32x256xf32>
    %55 = arith.mulf %1, %54 : vector<32x256xf32>
    %56 = vector.shape_cast %55 : vector<32x256xf32> to vector<2x16x256xf32>
    %c0_31 = arith.constant 0 : index
    %c0_32 = arith.constant 0 : index
    %c0_33 = arith.constant 0 : index
    %57 = vector.load %arg11[%c0_31, %c0_32, %c0_33] : memref<2x16x256xf32, #tpu.memory_space<vmem>>, vector<2x16x256xf32>
    tpu.vector_store %arg11[%c0_31, %c0_32, %c0_33], %56 {strides = array<i32>} : memref<2x16x256xf32, #tpu.memory_space<vmem>>, vector<2x16x256xf32>,
    return
  }
  func.func @transform_0(%arg0: i32) -> (i32, i32, i32) {
    %c0_i32 = arith.constant 0 : i32
    %c0_i32_0 = arith.constant 0 : i32
    %c0_i32_1 = arith.constant 0 : i32
    return %arg0, %c0_i32, %c0_i32_0 : i32, i32, i32
  }
  func.func @transform_1(%arg0: i32) -> (i32, i32) {
    %c0_i32 = arith.constant 0 : i32
    %c0_i32_0 = arith.constant 0 : i32
    %c0_i32_1 = arith.constant 0 : i32
    return %c0_i32, %c0_i32_0 : i32, i32
  }
  func.func @transform_2(%arg0: i32) -> (i32, i32) {
    %c0_i32 = arith.constant 0 : i32
    %c0_i32_0 = arith.constant 0 : i32
    %c0_i32_1 = arith.constant 0 : i32
    return %c0_i32, %c0_i32_0 : i32, i32
  }
  func.func @transform_3(%arg0: i32) -> (i32, i32) {
    %c0_i32 = arith.constant 0 : i32
    %c0_i32_0 = arith.constant 0 : i32
    %c0_i32_1 = arith.constant 0 : i32
    return %c0_i32, %c0_i32_0 : i32, i32
  }
  func.func @transform_4(%arg0: i32) -> (i32, i32) {
    %c0_i32 = arith.constant 0 : i32
    %c0_i32_0 = arith.constant 0 : i32
    %c0_i32_1 = arith.constant 0 : i32
    return %c0_i32, %c0_i32_0 : i32, i32
  }
  func.func @transform_5(%arg0: i32) -> (i32, i32) {
    %c0_i32 = arith.constant 0 : i32
    %c0_i32_0 = arith.constant 0 : i32
    %c0_i32_1 = arith.constant 0 : i32
    return %c0_i32, %c0_i32_0 : i32, i32
  }
  func.func @transform_6(%arg0: i32) -> (i32, i32) {
    %c0_i32 = arith.constant 0 : i32
    %c0_i32_0 = arith.constant 0 : i32
    %c0_i32_1 = arith.constant 0 : i32
    return %c0_i32, %c0_i32_0 : i32, i32
  }
  func.func @transform_7(%arg0: i32) -> (i32, i32) {
    %c0_i32 = arith.constant 0 : i32
    %c0_i32_0 = arith.constant 0 : i32
    %c0_i32_1 = arith.constant 0 : i32
    return %c0_i32, %c0_i32_0 : i32, i32
  }
  func.func @transform_8(%arg0: i32) -> (i32, i32) {
    %c0_i32 = arith.constant 0 : i32
    %c0_i32_0 = arith.constant 0 : i32
    %c0_i32_1 = arith.constant 0 : i32
    return %c0_i32, %c0_i32_0 : i32, i32
  }
  func.func @transform_9(%arg0: i32) -> (i32, i32) {
    %c0_i32 = arith.constant 0 : i32
    %c0_i32_0 = arith.constant 0 : i32
    %c0_i32_1 = arith.constant 0 : i32
    return %c0_i32, %c0_i32_0 : i32, i32
  }
  func.func @transform_10(%arg0: i32) -> (i32, i32, i32) {
    %c0_i32 = arith.constant 0 : i32
    %c0_i32_0 = arith.constant 0 : i32
    %c0_i32_1 = arith.constant 0 : i32
    return %arg0, %c0_i32, %c0_i32_0 : i32, i32, i32
  }
}

</mosaic_0001>

<llo_original>
// kernel: tpu_custom_call.1
$region0: #{tpu_custom_call.1}
  #allocation0 [shape = 'u32[]', space=smem, size = 0x4, offset = 0x4, fixed_abs, tag = 'smem constant byte address 0x4 - core index']
  #allocation1 [shape = 'u32[72,128]{1,0:T(1,128)}', space=vmem, size = 0x9000, scoped, tag = 'internal scratch']
  %s0 = inlined_call_operand.vmem [shape: f32[2,16,256], index: 0, kind: input, shape index: {}]
  %s1 = inlined_call_operand.vmem [shape: f32[256,32], index: 1, kind: input, shape index: {}]
  %s2 = inlined_call_operand.vmem [shape: f32[32,256], index: 2, kind: input, shape index: {}]
  %s3 = inlined_call_operand.vmem [shape: f32[32,256], index: 3, kind: input, shape index: {}]
  %s4 = inlined_call_operand.vmem [shape: f32[8,16], index: 4, kind: input, shape index: {}]
  %s5 = inlined_call_operand.vmem [shape: f32[8,1], index: 5, kind: input, shape index: {}]
  %s6 = inlined_call_operand.vmem [shape: f32[16,8], index: 6, kind: input, shape index: {}]
  %s7 = inlined_call_operand.vmem [shape: f32[16,1], index: 7, kind: input, shape index: {}]
  %s8 = inlined_call_operand.vmem [shape: f32[16,8], index: 8, kind: input, shape index: {}]
  %s9 = inlined_call_operand.vmem [shape: f32[16,1], index: 9, kind: input, shape index: {}]
  %s10 = inlined_call_operand.hbm [shape: f32[2,16,256], index: 10, kind: output, shape index: {}]
  %s11 = sld [smem:[#allocation0]]
  $region50: #{tpu_custom_call.1} parent=0
    _
  %s13 = ssub.s32 1, %s11
  %s14 = scalar_select 0, %s13, %s11
  $region1: #{tpu_custom_call.1} parent=0
    #allocation2 [shape = 'u8[32768]{0}', space=vmem, size = 0x8000, scoped, tag = 'output window, operand 0, single buffered']
    #allocation3 [shape = 's32[1]{0}', space=sflag, size = 0x4, scoped, tag = 'scoped memory for tpu_custom_call.1']
    %15 = vsyncpa [#allocation3], 0
    // Predicated region
    $region2: #{tpu_custom_call.1} parent=1 // pred_check
      _
    $region3: #{tpu_custom_call.1} parent=1 // pred_check_branch
      %17 = sbr.rel (0) target = $region5
    $region4: #{tpu_custom_call.1} parent=1 // pred_region
      _
    $region5: #{tpu_custom_call.1} parent=1 // pred_fallthru
      _
    // Predicated region
    $region6: #{tpu_custom_call.1} parent=1 // pred_check
      _
    $region7: #{tpu_custom_call.1} parent=1 // pred_check_branch
      %19 = sbr.rel (0) target = $region9
    $region8: #{tpu_custom_call.1} parent=1 // pred_region
      _
    $region9: #{tpu_custom_call.1} parent=1 // pred_fallthru
      _
    // Predicated region
    $region10: #{tpu_custom_call.1} parent=1 // pred_check
      _
    $region11: #{tpu_custom_call.1} parent=1 // pred_check_branch
      %21 = sbr.rel (0) target = $region13
    $region12: #{tpu_custom_call.1} parent=1 // pred_region
      _
    $region13: #{tpu_custom_call.1} parent=1 // pred_fallthru
      _
    // Predicated region
    $region14: #{tpu_custom_call.1} parent=1 // pred_check
      _
    $region15: #{tpu_custom_call.1} parent=1 // pred_check_branch
      %23 = sbr.rel (0) target = $region17
    $region16: #{tpu_custom_call.1} parent=1 // pred_region
      _
    $region17: #{tpu_custom_call.1} parent=1 // pred_fallthru
      _
    // Predicated region
    $region18: #{tpu_custom_call.1} parent=1 // pred_check
      _
    $region19: #{tpu_custom_call.1} parent=1 // pred_check_branch
      %25 = sbr.rel (0) target = $region21
    $region20: #{tpu_custom_call.1} parent=1 // pred_region
      _
    $region21: #{tpu_custom_call.1} parent=1 // pred_fallthru
      _
    // Predicated region
    $region22: #{tpu_custom_call.1} parent=1 // pred_check
      _
    $region23: #{tpu_custom_call.1} parent=1 // pred_check_branch
      %27 = sbr.rel (0) target = $region25
    $region24: #{tpu_custom_call.1} parent=1 // pred_region
      _
    $region25: #{tpu_custom_call.1} parent=1 // pred_fallthru
      _
    // Predicated region
    $region26: #{tpu_custom_call.1} parent=1 // pred_check
      _
    $region27: #{tpu_custom_call.1} parent=1 // pred_check_branch
      %29 = sbr.rel (0) target = $region29
    $region28: #{tpu_custom_call.1} parent=1 // pred_region
      _
    $region29: #{tpu_custom_call.1} parent=1 // pred_fallthru
      _
    // Predicated region
    $region30: #{tpu_custom_call.1} parent=1 // pred_check
      _
    $region31: #{tpu_custom_call.1} parent=1 // pred_check_branch
      %31 = sbr.rel (0) target = $region33
    $region32: #{tpu_custom_call.1} parent=1 // pred_region
      _
    $region33: #{tpu_custom_call.1} parent=1 // pred_fallthru
      _
    // Predicated region
    $region34: #{tpu_custom_call.1} parent=1 // pred_check
      _
    $region35: #{tpu_custom_call.1} parent=1 // pred_check_branch
      %33 = sbr.rel (0) target = $region37
    $region36: #{tpu_custom_call.1} parent=1 // pred_region
      _
    $region37: #{tpu_custom_call.1} parent=1 // pred_fallthru
      _
    // Predicated region
    $region38: #{tpu_custom_call.1} parent=1 // pred_check
      _
    $region39: #{tpu_custom_call.1} parent=1 // pred_check_branch
      %35 = sbr.rel (0) target = $region41
    $region40: #{tpu_custom_call.1} parent=1 // pred_region
      _
    $region41: #{tpu_custom_call.1} parent=1 // pred_fallthru
      _
    %v36 = vld [vmem:[%s0] sm:$0xff]
    %v37 = vld [vmem:[%s0 + $0x8] sm:$0xff]
    %v38 = vld [vmem:[%s0 + $0x10] sm:$0xff]
    %v39 = vld [vmem:[%s0 + $0x18] sm:$0xff]
    %v40 = vld [vmem:[%s0 + $0x20] sm:$0xff]
    %v41 = vld [vmem:[%s0 + $0x28] sm:$0xff]
    %v42 = vld [vmem:[%s0 + $0x30] sm:$0xff]
    %v43 = vld [vmem:[%s0 + $0x38] sm:$0xff]
    %v44 = vld [vmem:[%s1] sm:$0xff]
    %v45 = vld [vmem:[%s1 + $0x8] sm:$0xff]
    %v46 = vld [vmem:[%s1 + $0x10] sm:$0xff]
    %v47 = vld [vmem:[%s1 + $0x18] sm:$0xff]
    %v48 = vld [vmem:[%s1 + $0x20] sm:$0xff]
    %v49 = vld [vmem:[%s1 + $0x28] sm:$0xff]
    %v50 = vld [vmem:[%s1 + $0x30] sm:$0xff]
    %v51 = vld [vmem:[%s1 + $0x38] sm:$0xff]
    %v52 = vld [vmem:[%s1 + $0x40] sm:$0xff]
    %v53 = vld [vmem:[%s1 + $0x48] sm:$0xff]
    %v54 = vld [vmem:[%s1 + $0x50] sm:$0xff]
    %v55 = vld [vmem:[%s1 + $0x58] sm:$0xff]
    %v56 = vld [vmem:[%s1 + $0x60] sm:$0xff]
    %v57 = vld [vmem:[%s1 + $0x68] sm:$0xff]
    %v58 = vld [vmem:[%s1 + $0x70] sm:$0xff]
    %v59 = vld [vmem:[%s1 + $0x78] sm:$0xff]
    %v60 = vld [vmem:[%s1 + $0x80] sm:$0xff]
    %v61 = vld [vmem:[%s1 + $0x88] sm:$0xff]
    %v62 = vld [vmem:[%s1 + $0x90] sm:$0xff]
    %v63 = vld [vmem:[%s1 + $0x98] sm:$0xff]
    %v64 = vld [vmem:[%s1 + $0xa0] sm:$0xff]
    %v65 = vld [vmem:[%s1 + $0xa8] sm:$0xff]
    %v66 = vld [vmem:[%s1 + $0xb0] sm:$0xff]
    %v67 = vld [vmem:[%s1 + $0xb8] sm:$0xff]
    %v68 = vld [vmem:[%s1 + $0xc0] sm:$0xff]
    %v69 = vld [vmem:[%s1 + $0xc8] sm:$0xff]
    %v70 = vld [vmem:[%s1 + $0xd0] sm:$0xff]
    %v71 = vld [vmem:[%s1 + $0xd8] sm:$0xff]
    %v72 = vld [vmem:[%s1 + $0xe0] sm:$0xff]
    %v73 = vld [vmem:[%s1 + $0xe8] sm:$0xff]
    %v74 = vld [vmem:[%s1 + $0xf0] sm:$0xff]
    %v75 = vld [vmem:[%s1 + $0xf8] sm:$0xff]
    %76 = vmatpush.msra.mxu0 %v59
    %77 = vmatpush.msra.mxu0 %v58
    %78 = vmatpush.msra.mxu0 %v57
    %79 = vmatpush.msra.mxu0 %v56
    %80 = vmatpush.msra.mxu0 %v55
    %81 = vmatpush.msra.mxu0 %v54
    %82 = vmatpush.msra.mxu0 %v53
    %83 = vmatpush.msra.mxu0 %v52
    %84 = vmatpush.msra.mxu0 %v51
    %85 = vmatpush.msra.mxu0 %v50
    %86 = vmatpush.msra.mxu0 %v49
    %87 = vmatpush.msra.mxu0 %v48
    %88 = vmatpush.msra.mxu0 %v47
    %89 = vmatpush.msra.mxu0 %v46
    %90 = vmatpush.msra.mxu0 %v45
    %91 = vmatpush.msra.mxu0 %v44
    %92 = vmatmul.f32.gmra.mxu0 %v36
    %v93 = vpop.f32.mrf.mxu0
    %v94 = vadd.f32 0.0, %v93
    %95 = vmatmul.f32.gmra.mxu0 %v38
    %v96 = vpop.f32.mrf.mxu0
    %v97 = vadd.f32 0.0, %v96
    %98 = vmatmul.f32.gmra.mxu0 %v40
    %v99 = vpop.f32.mrf.mxu0
    %v100 = vadd.f32 0.0, %v99
    %101 = vmatmul.f32.gmra.mxu0 %v42
    %v102 = vpop.f32.mrf.mxu0
    %v103 = vadd.f32 0.0, %v102
    %104 = vdwg.mxu0
    %105 = vmatpush.msra.mxu0 %v75
    %106 = vmatpush.msra.mxu0 %v74
    %107 = vmatpush.msra.mxu0 %v73
    %108 = vmatpush.msra.mxu0 %v72
    %109 = vmatpush.msra.mxu0 %v71
    %110 = vmatpush.msra.mxu0 %v70
    %111 = vmatpush.msra.mxu0 %v69
    %112 = vmatpush.msra.mxu0 %v68
    %113 = vmatpush.msra.mxu0 %v67
    %114 = vmatpush.msra.mxu0 %v66
    %115 = vmatpush.msra.mxu0 %v65
    %116 = vmatpush.msra.mxu0 %v64
    %117 = vmatpush.msra.mxu0 %v63
    %118 = vmatpush.msra.mxu0 %v62
    %119 = vmatpush.msra.mxu0 %v61
    %120 = vmatpush.msra.mxu0 %v60
    %121 = vmatmul.f32.gmra.mxu0 %v37
    %v122 = vpop.f32.mrf.mxu0
    %v123 = vadd.f32 %v94, %v122
    %124 = vmatmul.f32.gmra.mxu0 %v39
    %v125 = vpop.f32.mrf.mxu0
    %v126 = vadd.f32 %v97, %v125
    %127 = vmatmul.f32.gmra.mxu0 %v41
    %v128 = vpop.f32.mrf.mxu0
    %v129 = vadd.f32 %v100, %v128
    %130 = vmatmul.f32.gmra.mxu0 %v43
    %v131 = vpop.f32.mrf.mxu0
    %v132 = vadd.f32 %v103, %v131
    %133 = vdwg.mxu0
    %v134 = vld [vmem:[%s4] sm:$0xff]
    %v135 = vld [vmem:[%s5] sm:$0xff]
    %137 = vset.pattern.permute.xlu0 0
    %138 = vperm.xlu0 %137, %v135
    %v139 = vpop.permute.xlu0 %138
    %vm141 = vcmask 130048
    %v143 = vsel %vm141, %v134, 0
    %145 = vmatpush.msra.mxu0 0.0
    %146 = vmatpush.msra.mxu0 0.0
    %147 = vmatpush.msra.mxu0 0.0
    %148 = vmatpush.msra.mxu0 0.0
    %149 = vmatpush.msra.mxu0 0.0
    %150 = vmatpush.msra.mxu0 0.0
    %151 = vmatpush.msra.mxu0 0.0
    %152 = vmatpush.msra.mxu0 0.0
    %153 = vmatpush.msra.mxu0 0.0
    %154 = vmatpush.msra.mxu0 0.0
    %155 = vmatpush.msra.mxu0 0.0
    %156 = vmatpush.msra.mxu0 0.0
    %157 = vmatpush.msra.mxu0 0.0
    %158 = vmatpush.msra.mxu0 0.0
    %159 = vmatpush.msra.mxu0 %v126
    %160 = vmatpush.msra.mxu0 %v123
    %161 = vmatmul.f32.gmra.mxu0 %v143
    %v162 = vpop.f32.mrf.mxu0
    %v163 = vadd.f32 %v139, %v162
    %164 = vdwg.mxu0
    %165 = vmatpush.msra.mxu0 0.0
    %166 = vmatpush.msra.mxu0 0.0
    %167 = vmatpush.msra.mxu0 0.0
    %168 = vmatpush.msra.mxu0 0.0
    %169 = vmatpush.msra.mxu0 0.0
    %170 = vmatpush.msra.mxu0 0.0
    %171 = vmatpush.msra.mxu0 0.0
    %172 = vmatpush.msra.mxu0 0.0
    %173 = vmatpush.msra.mxu0 0.0
    %174 = vmatpush.msra.mxu0 0.0
    %175 = vmatpush.msra.mxu0 0.0
    %176 = vmatpush.msra.mxu0 0.0
    %177 = vmatpush.msra.mxu0 0.0
    %178 = vmatpush.msra.mxu0 0.0
    %179 = vmatpush.msra.mxu0 %v132
    %180 = vmatpush.msra.mxu0 %v129
    %181 = vmatmul.f32.gmra.mxu0 %v143
    %v182 = vpop.f32.mrf.mxu0
    %v183 = vadd.f32 %v139, %v182
    %184 = vdwg.mxu0
    %v185 = vadd.f32 %v163, 3.0
    %v186 = vadd.f32 %v183, 3.0
    %v187 = vmax.f32 %v185, 0.0
    %v188 = vmax.f32 %v186, 0.0
    %v189 = vmin.f32 %v187, 6.0
    %v190 = vmin.f32 %v188, 6.0
    %v191 = vmul.f32 %v189, 0.16666667
    %v192 = vmul.f32 %v190, 0.16666667
    %v193 = vmul.f32 %v163, %v191
    %v194 = vmul.f32 %v183, %v192
    %v195 = vld [vmem:[%s6] sm:$0xff]
    %v196 = vld [vmem:[%s6 + $0x8] sm:$0xff]
    %v197 = vld [vmem:[%s8] sm:$0xff]
    %v198 = vld [vmem:[%s8 + $0x8] sm:$0xff]
    %v199 = vld [vmem:[%s7] sm:$0xff]
    %v200 = vld [vmem:[%s7 + $0x8] sm:$0xff]
    %202 = vset.pattern.permute.xlu0 0
    %203 = vperm.xlu0 %202, %v199
    %v204 = vpop.permute.xlu0 %203
    %207 = vset.pattern.permute.xlu0 0
    %208 = vperm.xlu0 %207, %v200
    %v209 = vpop.permute.xlu0 %208
    %vm211 = vcmask 64512
    %v213 = vsel %vm211, %v195, 0
    %v216 = vsel %vm211, %v196, 0
    %218 = vmatpush.msra.mxu0 0.0
    %219 = vmatpush.msra.mxu0 0.0
    %220 = vmatpush.msra.mxu0 0.0
    %221 = vmatpush.msra.mxu0 0.0
    %222 = vmatpush.msra.mxu0 0.0
    %223 = vmatpush.msra.mxu0 0.0
    %224 = vmatpush.msra.mxu0 0.0
    %225 = vmatpush.msra.mxu0 0.0
    %226 = vmatpush.msra.mxu0 0.0
    %227 = vmatpush.msra.mxu0 0.0
    %228 = vmatpush.msra.mxu0 0.0
    %229 = vmatpush.msra.mxu0 0.0
    %230 = vmatpush.msra.mxu0 0.0
    %231 = vmatpush.msra.mxu0 0.0
    %232 = vmatpush.msra.mxu0 0.0
    %233 = vmatpush.msra.mxu0 %v193
    %234 = vmatmul.f32.gmra.mxu0 %v213
    %v235 = vpop.f32.mrf.mxu0
    %v236 = vadd.f32 %v204, %v235
    %237 = vmatmul.f32.gmra.mxu0 %v216
    %v238 = vpop.f32.mrf.mxu0
    %v239 = vadd.f32 %v209, %v238
    %240 = vdwg.mxu0
    %241 = vmatpush.msra.mxu0 0.0
    %242 = vmatpush.msra.mxu0 0.0
    %243 = vmatpush.msra.mxu0 0.0
    %244 = vmatpush.msra.mxu0 0.0
    %245 = vmatpush.msra.mxu0 0.0
    %246 = vmatpush.msra.mxu0 0.0
    %247 = vmatpush.msra.mxu0 0.0
    %248 = vmatpush.msra.mxu0 0.0
    %249 = vmatpush.msra.mxu0 0.0
    %250 = vmatpush.msra.mxu0 0.0
    %251 = vmatpush.msra.mxu0 0.0
    %252 = vmatpush.msra.mxu0 0.0
    %253 = vmatpush.msra.mxu0 0.0
    %254 = vmatpush.msra.mxu0 0.0
    %255 = vmatpush.msra.mxu0 0.0
    %256 = vmatpush.msra.mxu0 %v194
    %257 = vmatmul.f32.gmra.mxu0 %v213
    %v258 = vpop.f32.mrf.mxu0
    %v259 = vadd.f32 %v204, %v258
    %260 = vmatmul.f32.gmra.mxu0 %v216
    %v261 = vpop.f32.mrf.mxu0
    %v262 = vadd.f32 %v209, %v261
    %263 = vdwg.mxu0
    %v264 = vxor.u32 %v236, 2147483648
    %v265 = vxor.u32 %v239, 2147483648
    %v266 = vxor.u32 %v259, 2147483648
    %v267 = vxor.u32 %v262, 2147483648
    %v268 = vmul.f32 %v264, 1.442695
    %v269 = vpow.pop %v268
    %v270 = vmul.f32 %v265, 1.442695
    %v271 = vpow.pop %v270
    %v272 = vmul.f32 %v266, 1.442695
    %v273 = vpow.pop %v272
    %v274 = vmul.f32 %v267, 1.442695
    %v275 = vpow.pop %v274
    %v276 = vadd.f32 %v269, 1.0
    %v277 = vadd.f32 %v271, 1.0
    %v278 = vadd.f32 %v273, 1.0
    %v279 = vadd.f32 %v275, 1.0
    %v280 = vrcp.pop %v276
    %v281 = vmul.f32 %v276, %v280
    %v282 = vsub.f32 1.0, %v281
    %v283 = vmul.f32 %v280, %v282
    %v284 = vadd.f32 %v280, %v283
    %vm285 = vweird.f32 %v276
    %vm286 = vweird.f32 %v280
    %vm287 = vmor %vm285, %vm286
    %v288 = vsel %vm287, %v280, %v284
    %v289 = vand.u32 2147483647, %v276
    %vm290 = vcmp.eq.f32.partialorder %v289, 8.507059e+37
    %v291 = vand.u32 %v276, 2147483648
    %v292 = vor.u32 1.1754944e-38, %v291
    %v293 = vsel %vm290, %v292, %v288
    %v294 = vmul.f32 1.0, %v293
    %v295 = vrcp.pop %v277
    %v296 = vmul.f32 %v277, %v295
    %v297 = vsub.f32 1.0, %v296
    %v298 = vmul.f32 %v295, %v297
    %v299 = vadd.f32 %v295, %v298
    %vm300 = vweird.f32 %v277
    %vm301 = vweird.f32 %v295
    %vm302 = vmor %vm300, %vm301
    %v303 = vsel %vm302, %v295, %v299
    %v304 = vand.u32 2147483647, %v277
    %vm305 = vcmp.eq.f32.partialorder %v304, 8.507059e+37
    %v306 = vand.u32 %v277, 2147483648
    %v307 = vor.u32 1.1754944e-38, %v306
    %v308 = vsel %vm305, %v307, %v303
    %v309 = vmul.f32 1.0, %v308
    %v310 = vrcp.pop %v278
    %v311 = vmul.f32 %v278, %v310
    %v312 = vsub.f32 1.0, %v311
    %v313 = vmul.f32 %v310, %v312
    %v314 = vadd.f32 %v310, %v313
    %vm315 = vweird.f32 %v278
    %vm316 = vweird.f32 %v310
    %vm317 = vmor %vm315, %vm316
    %v318 = vsel %vm317, %v310, %v314
    %v319 = vand.u32 2147483647, %v278
    %vm320 = vcmp.eq.f32.partialorder %v319, 8.507059e+37
    %v321 = vand.u32 %v278, 2147483648
    %v322 = vor.u32 1.1754944e-38, %v321
    %v323 = vsel %vm320, %v322, %v318
    %v324 = vmul.f32 1.0, %v323
    %v325 = vrcp.pop %v279
    %v326 = vmul.f32 %v279, %v325
    %v327 = vsub.f32 1.0, %v326
    %v328 = vmul.f32 %v325, %v327
    %v329 = vadd.f32 %v325, %v328
    %vm330 = vweird.f32 %v279
    %vm331 = vweird.f32 %v325
    %vm332 = vmor %vm330, %vm331
    %v333 = vsel %vm332, %v325, %v329
    %v334 = vand.u32 2147483647, %v279
    %vm335 = vcmp.eq.f32.partialorder %v334, 8.507059e+37
    %v336 = vand.u32 %v279, 2147483648
    %v337 = vor.u32 1.1754944e-38, %v336
    %v338 = vsel %vm335, %v337, %v333
    %v339 = vmul.f32 1.0, %v338
    %v340 = vld [vmem:[%s9] sm:$0xff]
    %v341 = vld [vmem:[%s9 + $0x8] sm:$0xff]
    %343 = vset.pattern.permute.xlu0 0
    %344 = vperm.xlu0 %343, %v340
    %v345 = vpop.permute.xlu0 %344
    %348 = vset.pattern.permute.xlu0 0
    %349 = vperm.xlu0 %348, %v341
    %v350 = vpop.permute.xlu0 %349
    %v353 = vsel %vm211, %v197, 0
    %v356 = vsel %vm211, %v198, 0
    %358 = vmatpush.msra.mxu0 0.0
    %359 = vmatpush.msra.mxu0 0.0
    %360 = vmatpush.msra.mxu0 0.0
    %361 = vmatpush.msra.mxu0 0.0
    %362 = vmatpush.msra.mxu0 0.0
    %363 = vmatpush.msra.mxu0 0.0
    %364 = vmatpush.msra.mxu0 0.0
    %365 = vmatpush.msra.mxu0 0.0
    %366 = vmatpush.msra.mxu0 0.0
    %367 = vmatpush.msra.mxu0 0.0
    %368 = vmatpush.msra.mxu0 0.0
    %369 = vmatpush.msra.mxu0 0.0
    %370 = vmatpush.msra.mxu0 0.0
    %371 = vmatpush.msra.mxu0 0.0
    %372 = vmatpush.msra.mxu0 0.0
    %373 = vmatpush.msra.mxu0 %v193
    %374 = vmatmul.f32.gmra.mxu0 %v353
    %v375 = vpop.f32.mrf.mxu0
    %v376 = vadd.f32 %v345, %v375
    %377 = vmatmul.f32.gmra.mxu0 %v356
    %v378 = vpop.f32.mrf.mxu0
    %v379 = vadd.f32 %v350, %v378
    %380 = vdwg.mxu0
    %381 = vmatpush.msra.mxu0 0.0
    %382 = vmatpush.msra.mxu0 0.0
    %383 = vmatpush.msra.mxu0 0.0
    %384 = vmatpush.msra.mxu0 0.0
    %385 = vmatpush.msra.mxu0 0.0
    %386 = vmatpush.msra.mxu0 0.0
    %387 = vmatpush.msra.mxu0 0.0
    %388 = vmatpush.msra.mxu0 0.0
    %389 = vmatpush.msra.mxu0 0.0
    %390 = vmatpush.msra.mxu0 0.0
    %391 = vmatpush.msra.mxu0 0.0
    %392 = vmatpush.msra.mxu0 0.0
    %393 = vmatpush.msra.mxu0 0.0
    %394 = vmatpush.msra.mxu0 0.0
    %395 = vmatpush.msra.mxu0 0.0
    %396 = vmatpush.msra.mxu0 %v194
    %397 = vmatmul.f32.gmra.mxu0 %v353
    %v398 = vpop.f32.mrf.mxu0
    %v399 = vadd.f32 %v345, %v398
    %400 = vmatmul.f32.gmra.mxu0 %v356
    %v401 = vpop.f32.mrf.mxu0
    %v402 = vadd.f32 %v350, %v401
    %403 = vdwg.mxu0
    %v404 = vxor.u32 %v376, 2147483648
    %v405 = vxor.u32 %v379, 2147483648
    %v406 = vxor.u32 %v399, 2147483648
    %v407 = vxor.u32 %v402, 2147483648
    %v408 = vmul.f32 %v404, 1.442695
    %v409 = vpow.pop %v408
    %v410 = vmul.f32 %v405, 1.442695
    %v411 = vpow.pop %v410
    %v412 = vmul.f32 %v406, 1.442695
    %v413 = vpow.pop %v412
    %v414 = vmul.f32 %v407, 1.442695
    %v415 = vpow.pop %v414
    %v416 = vadd.f32 %v409, 1.0
    %v417 = vadd.f32 %v411, 1.0
    %v418 = vadd.f32 %v413, 1.0
    %v419 = vadd.f32 %v415, 1.0
    %v420 = vrcp.pop %v416
    %v421 = vmul.f32 %v416, %v420
    %v422 = vsub.f32 1.0, %v421
    %v423 = vmul.f32 %v420, %v422
    %v424 = vadd.f32 %v420, %v423
    %vm425 = vweird.f32 %v416
    %vm426 = vweird.f32 %v420
    %vm427 = vmor %vm425, %vm426
    %v428 = vsel %vm427, %v420, %v424
    %v429 = vand.u32 2147483647, %v416
    %vm430 = vcmp.eq.f32.partialorder %v429, 8.507059e+37
    %v431 = vand.u32 %v416, 2147483648
    %v432 = vor.u32 1.1754944e-38, %v431
    %v433 = vsel %vm430, %v432, %v428
    %v434 = vmul.f32 1.0, %v433
    %v435 = vrcp.pop %v417
    %v436 = vmul.f32 %v417, %v435
    %v437 = vsub.f32 1.0, %v436
    %v438 = vmul.f32 %v435, %v437
    %v439 = vadd.f32 %v435, %v438
    %vm440 = vweird.f32 %v417
    %vm441 = vweird.f32 %v435
    %vm442 = vmor %vm440, %vm441
    %v443 = vsel %vm442, %v435, %v439
    %v444 = vand.u32 2147483647, %v417
    %vm445 = vcmp.eq.f32.partialorder %v444, 8.507059e+37
    %v446 = vand.u32 %v417, 2147483648
    %v447 = vor.u32 1.1754944e-38, %v446
    %v448 = vsel %vm445, %v447, %v443
    %v449 = vmul.f32 1.0, %v448
    %v450 = vrcp.pop %v418
    %v451 = vmul.f32 %v418, %v450
    %v452 = vsub.f32 1.0, %v451
    %v453 = vmul.f32 %v450, %v452
    %v454 = vadd.f32 %v450, %v453
    %vm455 = vweird.f32 %v418
    %vm456 = vweird.f32 %v450
    %vm457 = vmor %vm455, %vm456
    %v458 = vsel %vm457, %v450, %v454
    %v459 = vand.u32 2147483647, %v418
    %vm460 = vcmp.eq.f32.partialorder %v459, 8.507059e+37
    %v461 = vand.u32 %v418, 2147483648
    %v462 = vor.u32 1.1754944e-38, %v461
    %v463 = vsel %vm460, %v462, %v458
    %v464 = vmul.f32 1.0, %v463
    %v465 = vrcp.pop %v419
    %v466 = vmul.f32 %v419, %v465
    %v467 = vsub.f32 1.0, %v466
    %v468 = vmul.f32 %v465, %v467
    %v469 = vadd.f32 %v465, %v468
    %vm470 = vweird.f32 %v419
    %vm471 = vweird.f32 %v465
    %vm472 = vmor %vm470, %vm471
    %v473 = vsel %vm472, %v465, %v469
    %v474 = vand.u32 2147483647, %v419
    %vm475 = vcmp.eq.f32.partialorder %v474, 8.507059e+37
    %v476 = vand.u32 %v419, 2147483648
    %v477 = vor.u32 1.1754944e-38, %v476
    %v478 = vsel %vm475, %v477, %v473
    %v479 = vmul.f32 1.0, %v478
    %v480 = vld [vmem:[%s2] sm:$0xff]
    %v481 = vld [vmem:[%s2 + $0x8] sm:$0xff]
    %v482 = vld [vmem:[%s2 + $0x10] sm:$0xff]
    %v483 = vld [vmem:[%s2 + $0x18] sm:$0xff]
    %v484 = vld [vmem:[%s2 + $0x20] sm:$0xff]
    %v485 = vld [vmem:[%s2 + $0x28] sm:$0xff]
    %v486 = vld [vmem:[%s2 + $0x30] sm:$0xff]
    %v487 = vld [vmem:[%s2 + $0x38] sm:$0xff]
    %vm488 = vcmask 261120
    %v490 = vsel %vm488, %v294, 0
    %v493 = vsel %vm488, %v309, 0
    %v496 = vsel %vm488, %v324, 0
    %v499 = vsel %vm488, %v339, 0
    %501 = vmatpush.msra.mxu0 0.0
    %502 = vmatpush.msra.mxu0 0.0
    %503 = vmatpush.msra.mxu0 0.0
    %504 = vmatpush.msra.mxu0 0.0
    %505 = vmatpush.msra.mxu0 0.0
    %506 = vmatpush.msra.mxu0 0.0
    %507 = vmatpush.msra.mxu0 0.0
    %508 = vmatpush.msra.mxu0 0.0
    %509 = vmatpush.msra.mxu0 0.0
    %510 = vmatpush.msra.mxu0 0.0
    %511 = vmatpush.msra.mxu0 0.0
    %512 = vmatpush.msra.mxu0 0.0
    %513 = vmatpush.msra.mxu0 %v486
    %514 = vmatpush.msra.mxu0 %v484
    %515 = vmatpush.msra.mxu0 %v482
    %516 = vmatpush.msra.mxu0 %v480
    %517 = vmatmul.f32.gmra.mxu0 %v490
    %v518 = vpop.f32.mrf.mxu0
    %v519 = vadd.f32 0.0, %v518
    %520 = vmatmul.f32.gmra.mxu0 %v493
    %v521 = vpop.f32.mrf.mxu0
    %v522 = vadd.f32 0.0, %v521
    %523 = vmatmul.f32.gmra.mxu0 %v496
    %v524 = vpop.f32.mrf.mxu0
    %v525 = vadd.f32 0.0, %v524
    %526 = vmatmul.f32.gmra.mxu0 %v499
    %v527 = vpop.f32.mrf.mxu0
    %v528 = vadd.f32 0.0, %v527
    %529 = vdwg.mxu0
    %530 = vmatpush.msra.mxu0 0.0
    %531 = vmatpush.msra.mxu0 0.0
    %532 = vmatpush.msra.mxu0 0.0
    %533 = vmatpush.msra.mxu0 0.0
    %534 = vmatpush.msra.mxu0 0.0
    %535 = vmatpush.msra.mxu0 0.0
    %536 = vmatpush.msra.mxu0 0.0
    %537 = vmatpush.msra.mxu0 0.0
    %538 = vmatpush.msra.mxu0 0.0
    %539 = vmatpush.msra.mxu0 0.0
    %540 = vmatpush.msra.mxu0 0.0
    %541 = vmatpush.msra.mxu0 0.0
    %542 = vmatpush.msra.mxu0 %v487
    %543 = vmatpush.msra.mxu0 %v485
    %544 = vmatpush.msra.mxu0 %v483
    %545 = vmatpush.msra.mxu0 %v481
    %546 = vmatmul.f32.gmra.mxu0 %v490
    %v547 = vpop.f32.mrf.mxu0
    %v548 = vadd.f32 0.0, %v547
    %549 = vmatmul.f32.gmra.mxu0 %v493
    %v550 = vpop.f32.mrf.mxu0
    %v551 = vadd.f32 0.0, %v550
    %552 = vmatmul.f32.gmra.mxu0 %v496
    %v553 = vpop.f32.mrf.mxu0
    %v554 = vadd.f32 0.0, %v553
    %555 = vmatmul.f32.gmra.mxu0 %v499
    %v556 = vpop.f32.mrf.mxu0
    %v557 = vadd.f32 0.0, %v556
    %558 = vdwg.mxu0
    %v559 = vld [vmem:[%s3] sm:$0xff]
    %v560 = vld [vmem:[%s3 + $0x8] sm:$0xff]
    %v561 = vld [vmem:[%s3 + $0x10] sm:$0xff]
    %v562 = vld [vmem:[%s3 + $0x18] sm:$0xff]
    %v563 = vld [vmem:[%s3 + $0x20] sm:$0xff]
    %v564 = vld [vmem:[%s3 + $0x28] sm:$0xff]
    %v565 = vld [vmem:[%s3 + $0x30] sm:$0xff]
    %v566 = vld [vmem:[%s3 + $0x38] sm:$0xff]
    %v568 = vsel %vm488, %v434, 0
    %v571 = vsel %vm488, %v449, 0
    %v574 = vsel %vm488, %v464, 0
    %v577 = vsel %vm488, %v479, 0
    %579 = vmatpush.msra.mxu0 0.0
    %580 = vmatpush.msra.mxu0 0.0
    %581 = vmatpush.msra.mxu0 0.0
    %582 = vmatpush.msra.mxu0 0.0
    %583 = vmatpush.msra.mxu0 0.0
    %584 = vmatpush.msra.mxu0 0.0
    %585 = vmatpush.msra.mxu0 0.0
    %586 = vmatpush.msra.mxu0 0.0
    %587 = vmatpush.msra.mxu0 0.0
    %588 = vmatpush.msra.mxu0 0.0
    %589 = vmatpush.msra.mxu0 0.0
    %590 = vmatpush.msra.mxu0 0.0
    %591 = vmatpush.msra.mxu0 %v565
    %592 = vmatpush.msra.mxu0 %v563
    %593 = vmatpush.msra.mxu0 %v561
    %594 = vmatpush.msra.mxu0 %v559
    %595 = vmatmul.f32.gmra.mxu0 %v568
    %v596 = vpop.f32.mrf.mxu0
    %v597 = vadd.f32 0.0, %v596
    %598 = vmatmul.f32.gmra.mxu0 %v571
    %v599 = vpop.f32.mrf.mxu0
    %v600 = vadd.f32 0.0, %v599
    %601 = vmatmul.f32.gmra.mxu0 %v574
    %v602 = vpop.f32.mrf.mxu0
    %v603 = vadd.f32 0.0, %v602
    %604 = vmatmul.f32.gmra.mxu0 %v577
    %v605 = vpop.f32.mrf.mxu0
    %v606 = vadd.f32 0.0, %v605
    %607 = vdwg.mxu0
    %608 = vmatpush.msra.mxu0 0.0
    %609 = vmatpush.msra.mxu0 0.0
    %610 = vmatpush.msra.mxu0 0.0
    %611 = vmatpush.msra.mxu0 0.0
    %612 = vmatpush.msra.mxu0 0.0
    %613 = vmatpush.msra.mxu0 0.0
    %614 = vmatpush.msra.mxu0 0.0
    %615 = vmatpush.msra.mxu0 0.0
    %616 = vmatpush.msra.mxu0 0.0
    %617 = vmatpush.msra.mxu0 0.0
    %618 = vmatpush.msra.mxu0 0.0
    %619 = vmatpush.msra.mxu0 0.0
    %620 = vmatpush.msra.mxu0 %v566
    %621 = vmatpush.msra.mxu0 %v564
    %622 = vmatpush.msra.mxu0 %v562
    %623 = vmatpush.msra.mxu0 %v560
    %624 = vmatmul.f32.gmra.mxu0 %v568
    %v625 = vpop.f32.mrf.mxu0
    %v626 = vadd.f32 0.0, %v625
    %627 = vmatmul.f32.gmra.mxu0 %v571
    %v628 = vpop.f32.mrf.mxu0
    %v629 = vadd.f32 0.0, %v628
    %630 = vmatmul.f32.gmra.mxu0 %v574
    %v631 = vpop.f32.mrf.mxu0
    %v632 = vadd.f32 0.0, %v631
    %633 = vmatmul.f32.gmra.mxu0 %v577
    %v634 = vpop.f32.mrf.mxu0
    %v635 = vadd.f32 0.0, %v634
    %636 = vdwg.mxu0
    %v637 = vmul.f32 %v519, %v597
    %v638 = vmul.f32 %v548, %v626
    %v639 = vmul.f32 %v522, %v600
    %v640 = vmul.f32 %v551, %v629
    %v641 = vmul.f32 %v525, %v603
    %v642 = vmul.f32 %v554, %v632
    %v643 = vmul.f32 %v528, %v606
    %v644 = vmul.f32 %v557, %v635
    %v645 = vmul.f32 %v36, %v637
    %v646 = vmul.f32 %v37, %v638
    %v647 = vmul.f32 %v38, %v639
    %v648 = vmul.f32 %v39, %v640
    %v649 = vmul.f32 %v40, %v641
    %v650 = vmul.f32 %v41, %v642
    %v651 = vmul.f32 %v42, %v643
    %v652 = vmul.f32 %v43, %v644
    %653 = vst [vmem:[#allocation2] sm:$0xff] %v645
    %654 = vst [vmem:[#allocation2 + $0x8] sm:$0xff] %v646
    %655 = vst [vmem:[#allocation2 + $0x10] sm:$0xff] %v647
    %656 = vst [vmem:[#allocation2 + $0x18] sm:$0xff] %v648
    %657 = vst [vmem:[#allocation2 + $0x20] sm:$0xff] %v649
    %658 = vst [vmem:[#allocation2 + $0x28] sm:$0xff] %v650
    %659 = vst [vmem:[#allocation2 + $0x30] sm:$0xff] %v651
    %660 = vst [vmem:[#allocation2 + $0x38] sm:$0xff] %v652
    // Predicated region
    $region42: #{tpu_custom_call.1} parent=1 // pred_check
      _
    $region43: #{tpu_custom_call.1} parent=1 // pred_check_branch
      %662 = sbr.rel (0) target = $region45
    $region44: #{tpu_custom_call.1} parent=1 // pred_region
      %664 = vsyncadd [#allocation3], 0
      %s665 = sshll.u32 [#allocation2], 4
      %s666 = int_to_ptr.vmem [resolvable:$true] %s665
      %s667 = sshll.u32 %s10, 4
      %s668 = int_to_ptr.hbm [resolvable:$true] %s667
      %673 = dma.vmem_to_hbm [thread:$0]  %s666, 1024, %s668, [#allocation3], 256, 256, 16
    $region45: #{tpu_custom_call.1} parent=1 // pred_fallthru
      _
    // Predicated region
    $region46: #{tpu_custom_call.1} parent=1 // pred_check
      _
    $region47: #{tpu_custom_call.1} parent=1 // pred_check_branch
      %675 = sbr.rel (0) target = $region49
    $region48: #{tpu_custom_call.1} parent=1 // pred_region
      %677 = dma.done [#allocation3], 1024
    $region49: #{tpu_custom_call.1} parent=1 // pred_fallthru
      _
    %678 = vsyncpa [#allocation3], 1

</llo_original>
